<compile_context>
chip_gen: v7x
topology: tpu7x:2x2x1
jax: 0.10.0
libtpu: 0.0.40
codegen_flags: <defaults>
</compile_context>

<pallas_src>
import jax
import jax.numpy as jnp
from jax import lax
from jax.experimental import pallas as pl
from jax.experimental.pallas import tpu as pltpu

# ----- hyper-params (small, consistent with the module's __init__) -----------
N_EMBD = 32                          # n_embd
BLOCK_SIZE = 8                       # block_size (== T below)
NUM_HEADS = 4
HEAD_SIZE = N_EMBD // NUM_HEADS      # 8
QK_GROUP = NUM_HEADS * HEAD_SIZE     # 32 columns per Q / K group
SCALE = float(N_EMBD) ** -0.5        # PyTorch module scales by C**-0.5 (not hs**-0.5)
NEG_INF = -1e30                      # finite mask value (avoids inf-inf -> NaN hazards)


# ----------------------------- fused kernel ----------------------------------
def _mha_fused_kernel(x_ref, wqk_ref, wvp_ref, bproj_ref, o_ref):
    """Fused MHA for one batch element.

    x_ref     : (1, T, C)
    wqk_ref   : (C, 2*H*hs)   columns = [Q heads (pre-scaled) | K heads], head-major
    wvp_ref   : (C, H*C)      per-head folded (Wv_h @ Wproj_rows_h), head-major
    bproj_ref : (1, C)
    o_ref     : (1, T, C)
    """
    x = x_ref[0]                                                     # (T, C)
    T = x.shape[0]

    # All heads' q/k in one lane-dense matmul: (T, C) @ (C, 2*H*hs).
    qk = jnp.dot(x, wqk_ref[...], preferred_element_type=jnp.float32)
    # Folded value+projection for all heads: (T, C) @ (C, H*C) -> 128 lanes.
    vp = jnp.dot(x, wvp_ref[...], preferred_element_type=jnp.float32)

    # Static additive causal (tril) mask, built once for all heads.
    row = lax.broadcasted_iota(jnp.int32, (T, T), 0)
    col = lax.broadcasted_iota(jnp.int32, (T, T), 1)
    addmask = jnp.where(col <= row, 0.0, NEG_INF)                    # (T, T) f32

    acc = None
    for h in range(NUM_HEADS):                                       # static unroll
        lo = h * HEAD_SIZE
        q = qk[:, lo:lo + HEAD_SIZE]                                 # (T, hs), pre-scaled
        k = qk[:, QK_GROUP + lo:QK_GROUP + lo + HEAD_SIZE]           # (T, hs)

        # q @ k^T without materialising a transpose (contract last dims).
        s = lax.dot_general(q, k, (((1,), (1,)), ((), ())),
                            preferred_element_type=jnp.float32)      # (T, T)
        s = s + addmask

        # numerically-stable softmax along last axis
        s = s - jnp.max(s, axis=-1, keepdims=True)
        p = jnp.exp(s)
        denom = jnp.sum(p, axis=-1, keepdims=True)
        # EUP reciprocal (free slot) + one Newton step to keep fp32 accuracy.
        r = pl.reciprocal(denom, approx=True)
        r = r * (2.0 - denom * r)
        p = p * r

        # P_h @ Vp_h already carries the output projection for this head.
        o_h = jnp.dot(p, vp[:, h * N_EMBD:(h + 1) * N_EMBD],
                      preferred_element_type=jnp.float32)            # (T, C)
        acc = o_h if acc is None else acc + o_h

    o_ref[0] = acc + bproj_ref[...]                                  # bias broadcasts


# ----------------------------- wrapper ----------------------------------------
def multi_head_attention(x, wq, wk, wv, w_proj, b_proj):
    """x: (B, T, C) f32; wq/wk/wv: (H, C, hs); w_proj: (C, C); b_proj: (C,)."""
    B, T, C = x.shape
    H, _, hs = wq.shape

    # One-time weight prep (outside the kernel):
    #   - stack Q|K per-head weights into (C, 2*H*hs), Q columns pre-scaled,
    #   - fold each head's value weight with its rows of the output projection
    #     and stack to (C, H*C)  (lane-dense: H*C = 128).
    def _flat(w):                                 # (H, C, hs) -> (C, H*hs)
        return jnp.transpose(w, (1, 0, 2)).reshape(C, H * hs)

    w_qk = jnp.concatenate([_flat(wq) * SCALE, _flat(wk)], axis=1)          # (C, 2*H*hs)
    w_vp = jnp.concatenate(
        [wv[h] @ w_proj[h * hs:(h + 1) * hs, :] for h in range(H)], axis=1)  # (C, H*C)

    return pl.pallas_call(
        _mha_fused_kernel,
        out_shape=jax.ShapeDtypeStruct((B, T, C), jnp.float32),
        grid_spec=pltpu.PrefetchScalarGridSpec(
            num_scalar_prefetch=0,
            grid=(B,),                                              # one step per batch
            in_specs=[
                pl.BlockSpec((1, T, C), lambda b: (b, 0, 0)),       # x[b]
                pl.BlockSpec((C, 2 * H * hs), lambda b: (0, 0)),    # stacked Q|K weights
                pl.BlockSpec((C, H * C), lambda b: (0, 0)),         # folded V*proj weights
                pl.BlockSpec((1, C), lambda b: (0, 0)),             # proj bias
            ],
            out_specs=pl.BlockSpec((1, T, C), lambda b: (b, 0, 0)),
        ),
        compiler_params=pltpu.CompilerParams(
            dimension_semantics=("parallel",)),                     # v7x: 2 TCs, 1 batch each
    )(x, w_qk, w_vp, b_proj.reshape(1, C))


# ----------------------------- pure-JAX reference ------------------------------
def _reference(x, wq, wk, wv, w_proj, b_proj):
    B, T, C = x.shape
    H, _, hs = wq.shape
    outs = []
    tril = jnp.tril(jnp.ones((T, T), dtype=bool))
    for h in range(H):
        q = x @ wq[h]
        k = x @ wk[h]
        v = x @ wv[h]
        wei = (q @ jnp.swapaxes(k, -2, -1)) * SCALE
        wei = jnp.where(tril, wei, -jnp.inf)
        wei = jax.nn.softmax(wei, axis=-1)
        outs.append(wei @ v)
    cat = jnp.concatenate(outs, axis=-1)
    return cat @ w_proj + b_proj


# ----------------------------- main -------------------------------------------
if __name__ == "__main__":
    key = jax.random.PRNGKey(0)
    k_x, k_q, k_k, k_v, k_p, k_b = jax.random.split(key, 6)

    B, T, C = 2, BLOCK_SIZE, N_EMBD
    x = jax.random.normal(k_x, (B, T, C), dtype=jnp.float32)

    # Parameters (stored pre-transposed so y = x @ W matches nn.Linear's x @ W.T).
    wq = jax.random.normal(k_q, (NUM_HEADS, C, HEAD_SIZE), dtype=jnp.float32) * 0.1
    wk = jax.random.normal(k_k, (NUM_HEADS, C, HEAD_SIZE), dtype=jnp.float32) * 0.1
    wv = jax.random.normal(k_v, (NUM_HEADS, C, HEAD_SIZE), dtype=jnp.float32) * 0.1
    w_proj = jax.random.normal(k_p, (C, C), dtype=jnp.float32) * 0.1
    b_proj = jax.random.normal(k_b, (C,), dtype=jnp.float32) * 0.1

    out = multi_head_attention(x, wq, wk, wv, w_proj, b_proj)
    out = jax.block_until_ready(out)

    ref = _reference(x, wq, wk, wv, w_proj, b_proj)
    assert out.shape == (B, T, C)
    assert jnp.allclose(out, ref, atol=1e-4, rtol=1e-4), "mismatch vs reference"

    print("KERNEL_OK")
</pallas_src>

<mosaic_0001>
module attributes {stable_mosaic.version = 11 : i64} {
  func.func @_mha_fused_kernel(%arg0: i32, %arg1: memref<1x8x32xf32, #tpu.memory_space<vmem>>, %arg2: memref<32x64xf32, #tpu.memory_space<vmem>>, %arg3: memref<32x128xf32, #tpu.memory_space<vmem>>, %arg4: memref<1x32xf32, #tpu.memory_space<vmem>>, %arg5: memref<1x8x32xf32, #tpu.memory_space<vmem>>) attributes {dimension_semantics = [#tpu.dimension_semantics<parallel>], iteration_bounds = array<i64: 2>, scalar_prefetch = 0 : i64, scratch_operands = 0 : i64, tpu.core_type = #tpu.core_type<tc>, window_params = [{transform_indices = @transform_0, window_bounds = array<i64: 1, 8, 32>}, {pipeline_mode = #tpu.pipeline_mode<synchronous>, transform_indices = @transform_1, window_bounds = array<i64: 32, 64>}, {pipeline_mode = #tpu.pipeline_mode<synchronous>, transform_indices = @transform_2, window_bounds = array<i64: 32, 128>}, {pipeline_mode = #tpu.pipeline_mode<synchronous>, transform_indices = @transform_3, window_bounds = array<i64: 1, 32>}, {transform_indices = @transform_4, window_bounds = array<i64: 1, 8, 32>}]} {
    %c0 = arith.constant 0 : index
    %c0_0 = arith.constant 0 : index
    %c0_1 = arith.constant 0 : index
    %0 = vector.load %arg1[%c0, %c0_0, %c0_1] : memref<1x8x32xf32, #tpu.memory_space<vmem>>, vector<1x8x32xf32>
    %1 = vector.shape_cast %0 : vector<1x8x32xf32> to vector<8x32xf32>
    %c0_2 = arith.constant 0 : index
    %c0_3 = arith.constant 0 : index
    %2 = vector.load %arg2[%c0_2, %c0_3] : memref<32x64xf32, #tpu.memory_space<vmem>>, vector<32x64xf32>
    %cst = arith.constant dense<0.000000e+00> : vector<8x64xf32>
    %3 = tpu.matmul %1, %2, %cst {dimension_numbers = #tpu.dot_dimension_numbers<[1], [0], [0], [1], [0, 0, 1, 1], [], []>} : vector<8x32xf32>, vector<32x64xf32>, vector<8x64xf32> -> vector<8x64xf32>
    %c0_4 = arith.constant 0 : index
    %c0_5 = arith.constant 0 : index
    %4 = vector.load %arg3[%c0_4, %c0_5] : memref<32x128xf32, #tpu.memory_space<vmem>>, vector<32x128xf32>
    %cst_6 = arith.constant dense<0.000000e+00> : vector<8x128xf32>
    %5 = tpu.matmul %1, %4, %cst_6 {dimension_numbers = #tpu.dot_dimension_numbers<[1], [0], [0], [1], [0, 0, 1, 1], [], []>} : vector<8x32xf32>, vector<32x128xf32>, vector<8x128xf32> -> vector<8x128xf32>
    %6 = tpu.iota {dimensions = array<i32: 0>} : vector<8x8xi32>
    %7 = tpu.iota {dimensions = array<i32: 1>} : vector<8x8xi32>
    %8 = arith.cmpi sle, %7, %6 : vector<8x8xi32>
    %cst_7 = arith.constant 0.000000e+00 : f32
    %cst_8 = arith.constant -1.000000e+30 : f32
    %9 = vector.broadcast %cst_7 : f32 to vector<8x8xf32>
    %10 = vector.broadcast %cst_8 : f32 to vector<8x8xf32>
    %11 = arith.select %8, %9, %10 : vector<8x8xi1>, vector<8x8xf32>
    %12 = vector.extract_strided_slice %3 {offsets = [0, 0], sizes = [8, 8], strides = [1, 1]} : vector<8x64xf32> to vector<8x8xf32>
    %13 = vector.extract_strided_slice %3 {offsets = [0, 32], sizes = [8, 8], strides = [1, 1]} : vector<8x64xf32> to vector<8x8xf32>
    %cst_9 = arith.constant dense<0.000000e+00> : vector<8x8xf32>
    %14 = tpu.matmul %12, %13, %cst_9 {dimension_numbers = #tpu.dot_dimension_numbers<[1], [1], [0], [0], [0, 0, 1, 0], [], []>} : vector<8x8xf32>, vector<8x8xf32>, vector<8x8xf32> -> vector<8x8xf32>
    %15 = arith.addf %14, %11 : vector<8x8xf32>
    %cst_10 = arith.constant dense<0xFF800000> : vector<8xf32>
    %16 = vector.multi_reduction <maximumf>, %15, %cst_10 [1] : vector<8x8xf32> to vector<8xf32>
    %17 = vector.shape_cast %16 : vector<8xf32> to vector<8x1xf32>
    %18 = vector.broadcast %17 : vector<8x1xf32> to vector<8x8xf32>
    %19 = arith.subf %15, %18 : vector<8x8xf32>
    %20 = math.exp %19 : vector<8x8xf32>
    %cst_11 = arith.constant dense<0.000000e+00> : vector<8xf32>
    %21 = vector.multi_reduction <add>, %20, %cst_11 [1] : vector<8x8xf32> to vector<8xf32>
    %22 = vector.shape_cast %21 : vector<8xf32> to vector<8x1xf32>
    %23 = tpu.reciprocal %22 {approx = true} : vector<8x1xf32> -> vector<8x1xf32>
    %24 = arith.mulf %22, %23 : vector<8x1xf32>
    %cst_12 = arith.constant 2.000000e+00 : f32
    %25 = vector.broadcast %cst_12 : f32 to vector<8x1xf32>
    %26 = arith.subf %25, %24 : vector<8x1xf32>
    %27 = arith.mulf %23, %26 : vector<8x1xf32>
    %28 = vector.broadcast %27 : vector<8x1xf32> to vector<8x8xf32>
    %29 = arith.mulf %20, %28 : vector<8x8xf32>
    %30 = vector.extract_strided_slice %5 {offsets = [0, 0], sizes = [8, 32], strides = [1, 1]} : vector<8x128xf32> to vector<8x32xf32>
    %cst_13 = arith.constant dense<0.000000e+00> : vector<8x32xf32>
    %31 = tpu.matmul %29, %30, %cst_13 {dimension_numbers = #tpu.dot_dimension_numbers<[1], [0], [0], [1], [0, 0, 1, 1], [], []>} : vector<8x8xf32>, vector<8x32xf32>, vector<8x32xf32> -> vector<8x32xf32>
    %32 = vector.extract_strided_slice %3 {offsets = [0, 8], sizes = [8, 8], strides = [1, 1]} : vector<8x64xf32> to vector<8x8xf32>
    %33 = vector.extract_strided_slice %3 {offsets = [0, 40], sizes = [8, 8], strides = [1, 1]} : vector<8x64xf32> to vector<8x8xf32>
    %cst_14 = arith.constant dense<0.000000e+00> : vector<8x8xf32>
    %34 = tpu.matmul %32, %33, %cst_14 {dimension_numbers = #tpu.dot_dimension_numbers<[1], [1], [0], [0], [0, 0, 1, 0], [], []>} : vector<8x8xf32>, vector<8x8xf32>, vector<8x8xf32> -> vector<8x8xf32>
    %35 = arith.addf %34, %11 : vector<8x8xf32>
    %cst_15 = arith.constant dense<0xFF800000> : vector<8xf32>
    %36 = vector.multi_reduction <maximumf>, %35, %cst_15 [1] : vector<8x8xf32> to vector<8xf32>
    %37 = vector.shape_cast %36 : vector<8xf32> to vector<8x1xf32>
    %38 = vector.broadcast %37 : vector<8x1xf32> to vector<8x8xf32>
    %39 = arith.subf %35, %38 : vector<8x8xf32>
    %40 = math.exp %39 : vector<8x8xf32>
    %cst_16 = arith.constant dense<0.000000e+00> : vector<8xf32>
    %41 = vector.multi_reduction <add>, %40, %cst_16 [1] : vector<8x8xf32> to vector<8xf32>
    %42 = vector.shape_cast %41 : vector<8xf32> to vector<8x1xf32>
    %43 = tpu.reciprocal %42 {approx = true} : vector<8x1xf32> -> vector<8x1xf32>
    %44 = arith.mulf %42, %43 : vector<8x1xf32>
    %cst_17 = arith.constant 2.000000e+00 : f32
    %45 = vector.broadcast %cst_17 : f32 to vector<8x1xf32>
    %46 = arith.subf %45, %44 : vector<8x1xf32>
    %47 = arith.mulf %43, %46 : vector<8x1xf32>
    %48 = vector.broadcast %47 : vector<8x1xf32> to vector<8x8xf32>
    %49 = arith.mulf %40, %48 : vector<8x8xf32>
    %50 = vector.extract_strided_slice %5 {offsets = [0, 32], sizes = [8, 32], strides = [1, 1]} : vector<8x128xf32> to vector<8x32xf32>
    %cst_18 = arith.constant dense<0.000000e+00> : vector<8x32xf32>
    %51 = tpu.matmul %49, %50, %cst_18 {dimension_numbers = #tpu.dot_dimension_numbers<[1], [0], [0], [1], [0, 0, 1, 1], [], []>} : vector<8x8xf32>, vector<8x32xf32>, vector<8x32xf32> -> vector<8x32xf32>
    %52 = arith.addf %31, %51 : vector<8x32xf32>
    %53 = vector.extract_strided_slice %3 {offsets = [0, 16], sizes = [8, 8], strides = [1, 1]} : vector<8x64xf32> to vector<8x8xf32>
    %54 = vector.extract_strided_slice %3 {offsets = [0, 48], sizes = [8, 8], strides = [1, 1]} : vector<8x64xf32> to vector<8x8xf32>
    %cst_19 = arith.constant dense<0.000000e+00> : vector<8x8xf32>
    %55 = tpu.matmul %53, %54, %cst_19 {dimension_numbers = #tpu.dot_dimension_numbers<[1], [1], [0], [0], [0, 0, 1, 0], [], []>} : vector<8x8xf32>, vector<8x8xf32>, vector<8x8xf32> -> vector<8x8xf32>
    %56 = arith.addf %55, %11 : vector<8x8xf32>
    %cst_20 = arith.constant dense<0xFF800000> : vector<8xf32>
    %57 = vector.multi_reduction <maximumf>, %56, %cst_20 [1] : vector<8x8xf32> to vector<8xf32>
    %58 = vector.shape_cast %57 : vector<8xf32> to vector<8x1xf32>
    %59 = vector.broadcast %58 : vector<8x1xf32> to vector<8x8xf32>
    %60 = arith.subf %56, %59 : vector<8x8xf32>
    %61 = math.exp %60 : vector<8x8xf32>
    %cst_21 = arith.constant dense<0.000000e+00> : vector<8xf32>
    %62 = vector.multi_reduction <add>, %61, %cst_21 [1] : vector<8x8xf32> to vector<8xf32>
    %63 = vector.shape_cast %62 : vector<8xf32> to vector<8x1xf32>
    %64 = tpu.reciprocal %63 {approx = true} : vector<8x1xf32> -> vector<8x1xf32>
    %65 = arith.mulf %63, %64 : vector<8x1xf32>
    %cst_22 = arith.constant 2.000000e+00 : f32
    %66 = vector.broadcast %cst_22 : f32 to vector<8x1xf32>
    %67 = arith.subf %66, %65 : vector<8x1xf32>
    %68 = arith.mulf %64, %67 : vector<8x1xf32>
    %69 = vector.broadcast %68 : vector<8x1xf32> to vector<8x8xf32>
    %70 = arith.mulf %61, %69 : vector<8x8xf32>
    %71 = vector.extract_strided_slice %5 {offsets = [0, 64], sizes = [8, 32], strides = [1, 1]} : vector<8x128xf32> to vector<8x32xf32>
    %cst_23 = arith.constant dense<0.000000e+00> : vector<8x32xf32>
    %72 = tpu.matmul %70, %71, %cst_23 {dimension_numbers = #tpu.dot_dimension_numbers<[1], [0], [0], [1], [0, 0, 1, 1], [], []>} : vector<8x8xf32>, vector<8x32xf32>, vector<8x32xf32> -> vector<8x32xf32>
    %73 = arith.addf %52, %72 : vector<8x32xf32>
    %74 = vector.extract_strided_slice %3 {offsets = [0, 24], sizes = [8, 8], strides = [1, 1]} : vector<8x64xf32> to vector<8x8xf32>
    %75 = vector.extract_strided_slice %3 {offsets = [0, 56], sizes = [8, 8], strides = [1, 1]} : vector<8x64xf32> to vector<8x8xf32>
    %cst_24 = arith.constant dense<0.000000e+00> : vector<8x8xf32>
    %76 = tpu.matmul %74, %75, %cst_24 {dimension_numbers = #tpu.dot_dimension_numbers<[1], [1], [0], [0], [0, 0, 1, 0], [], []>} : vector<8x8xf32>, vector<8x8xf32>, vector<8x8xf32> -> vector<8x8xf32>
    %77 = arith.addf %76, %11 : vector<8x8xf32>
    %cst_25 = arith.constant dense<0xFF800000> : vector<8xf32>
    %78 = vector.multi_reduction <maximumf>, %77, %cst_25 [1] : vector<8x8xf32> to vector<8xf32>
    %79 = vector.shape_cast %78 : vector<8xf32> to vector<8x1xf32>
    %80 = vector.broadcast %79 : vector<8x1xf32> to vector<8x8xf32>
    %81 = arith.subf %77, %80 : vector<8x8xf32>
    %82 = math.exp %81 : vector<8x8xf32>
    %cst_26 = arith.constant dense<0.000000e+00> : vector<8xf32>
    %83 = vector.multi_reduction <add>, %82, %cst_26 [1] : vector<8x8xf32> to vector<8xf32>
    %84 = vector.shape_cast %83 : vector<8xf32> to vector<8x1xf32>
    %85 = tpu.reciprocal %84 {approx = true} : vector<8x1xf32> -> vector<8x1xf32>
    %86 = arith.mulf %84, %85 : vector<8x1xf32>
    %cst_27 = arith.constant 2.000000e+00 : f32
    %87 = vector.broadcast %cst_27 : f32 to vector<8x1xf32>
    %88 = arith.subf %87, %86 : vector<8x1xf32>
    %89 = arith.mulf %85, %88 : vector<8x1xf32>
    %90 = vector.broadcast %89 : vector<8x1xf32> to vector<8x8xf32>
    %91 = arith.mulf %82, %90 : vector<8x8xf32>
    %92 = vector.extract_strided_slice %5 {offsets = [0, 96], sizes = [8, 32], strides = [1, 1]} : vector<8x128xf32> to vector<8x32xf32>
    %cst_28 = arith.constant dense<0.000000e+00> : vector<8x32xf32>
    %93 = tpu.matmul %91, %92, %cst_28 {dimension_numbers = #tpu.dot_dimension_numbers<[1], [0], [0], [1], [0, 0, 1, 1], [], []>} : vector<8x8xf32>, vector<8x32xf32>, vector<8x32xf32> -> vector<8x32xf32>
    %94 = arith.addf %73, %93 : vector<8x32xf32>
    %c0_29 = arith.constant 0 : index
    %c0_30 = arith.constant 0 : index
    %95 = vector.load %arg4[%c0_29, %c0_30] : memref<1x32xf32, #tpu.memory_space<vmem>>, vector<1x32xf32>
    %96 = vector.broadcast %95 : vector<1x32xf32> to vector<8x32xf32>
    %97 = arith.addf %94, %96 : vector<8x32xf32>
    %c0_31 = arith.constant 0 : index
    %c0_32 = arith.constant 0 : index
    %c0_33 = arith.constant 0 : index
    %98 = vector.load %arg5[%c0_31, %c0_32, %c0_33] : memref<1x8x32xf32, #tpu.memory_space<vmem>>, vector<1x8x32xf32>
    %99 = vector.shape_cast %98 : vector<1x8x32xf32> to vector<8x32xf32>
    %100 = vector.shape_cast %97 : vector<8x32xf32> to vector<1x8x32xf32>
    tpu.vector_store %arg5[%c0_31, %c0_32, %c0_33], %100 {strides = array<i32>} : memref<1x8x32xf32, #tpu.memory_space<vmem>>, vector<1x8x32xf32>,
    return
  }
  func.func @transform_0(%arg0: i32) -> (i32, i32, i32) {
    %c0_i32 = arith.constant 0 : i32
    %c0_i32_0 = arith.constant 0 : i32
    %c0_i32_1 = arith.constant 0 : i32
    return %arg0, %c0_i32, %c0_i32_0 : i32, i32, i32
  }
  func.func @transform_1(%arg0: i32) -> (i32, i32) {
    %c0_i32 = arith.constant 0 : i32
    %c0_i32_0 = arith.constant 0 : i32
    %c0_i32_1 = arith.constant 0 : i32
    return %c0_i32, %c0_i32_0 : i32, i32
  }
  func.func @transform_2(%arg0: i32) -> (i32, i32) {
    %c0_i32 = arith.constant 0 : i32
    %c0_i32_0 = arith.constant 0 : i32
    %c0_i32_1 = arith.constant 0 : i32
    return %c0_i32, %c0_i32_0 : i32, i32
  }
  func.func @transform_3(%arg0: i32) -> (i32, i32) {
    %c0_i32 = arith.constant 0 : i32
    %c0_i32_0 = arith.constant 0 : i32
    %c0_i32_1 = arith.constant 0 : i32
    return %c0_i32, %c0_i32_0 : i32, i32
  }
  func.func @transform_4(%arg0: i32) -> (i32, i32, i32) {
    %c0_i32 = arith.constant 0 : i32
    %c0_i32_0 = arith.constant 0 : i32
    %c0_i32_1 = arith.constant 0 : i32
    return %arg0, %c0_i32, %c0_i32_0 : i32, i32, i32
  }
}

</mosaic_0001>

<llo_original>
// kernel: tpu_custom_call.1
$region0: #{tpu_custom_call.1}
  #allocation0 [shape = 'u32[]', space=smem, size = 0x4, offset = 0x4, fixed_abs, tag = 'smem constant byte address 0x4 - core index']
  #allocation1 [shape = 'u32[144,128]{1,0:T(1,128)}', space=vmem, size = 0x12000, scoped, tag = 'internal scratch']
  %s0 = inlined_call_operand.hbm [shape: f32[2,8,32], index: 0, kind: input, shape index: {}]
  %s1 = inlined_call_operand.hbm [shape: f32[32,64], index: 1, kind: input, shape index: {}]
  %s2 = inlined_call_operand.hbm [shape: f32[32,128], index: 2, kind: input, shape index: {}]
  %s3 = inlined_call_operand.vmem [shape: f32[1,32], index: 3, kind: input, shape index: {}]
  %s4 = inlined_call_operand.hbm [shape: f32[2,8,32], index: 4, kind: output, shape index: {}]
  %s5 = sld [smem:[#allocation0]]
  $region61: #{tpu_custom_call.1} parent=0
    _
  %s7 = ssub.s32 1, %s5
  %s8 = scalar_select 0, %s7, %s5
  $region1: #{tpu_custom_call.1} parent=0
    #allocation2 [shape = 'u8[8192]{0}', space=vmem, size = 0x2000, scoped, tag = 'input window, operand 0']
    #allocation3 [shape = 's32[2]{0}', space=sflag, size = 0x8, scoped, tag = 'scoped memory for tpu_custom_call.1']
    #allocation4 [shape = 's32[2]{0}', space=sflag, size = 0x8, scoped, tag = 'scoped memory for tpu_custom_call.1']
    #allocation5 [shape = 'u8[16384]{0}', space=vmem, size = 0x4000, scoped, tag = 'input window, operand 1, single buffered']
    #allocation6 [shape = 's32[1]{0}', space=sflag, size = 0x4, scoped, tag = 'scoped memory for tpu_custom_call.1']
    #allocation7 [shape = 'u8[16384]{0}', space=vmem, size = 0x4000, scoped, tag = 'input window, operand 2, single buffered']
    #allocation8 [shape = 'u8[8192]{0}', space=vmem, size = 0x2000, scoped, tag = 'output window, operand 0']
    %9 = vsyncpa [#allocation3], 0
    %s10 = scalar_lea.sflag [#allocation3], 1
    %11 = vsyncpa %s10, 0
    %12 = vsyncpa [#allocation6], 0
    %13 = vsyncpa [#allocation4], 0
    %s14 = scalar_lea.sflag [#allocation4], 1
    %15 = vsyncpa %s14, 0
    loop: start=0, step=1, limit=4
    $region2: #{tpu_custom_call.1} parent=1 // loop_pre_header
      _
    $region3: #{tpu_custom_call.1} parent=1 // loop_header
      %s17 = sphi 0, %s21
      %p18 = scmp.ge.s32.totalorder %s17, 4
      %s27 = sphi 0, %s29
      %s30 = sphi 0, %s27
      %s31 = sphi 0, %s30
      %s47 = sphi 0, %s31
      %s51 = sphi 0, %s51
      %s53 = sphi 0, %s51
      %s54 = sphi 0, %s53
      %s68 = sphi 0, %s54
      %s72 = sphi 0, %s72
      %s74 = sphi 0, %s72
      %s75 = sphi 0, %s74
      %s89 = sphi 0, %s75
      %s93 = sphi 0, %s93
      %s95 = sphi 0, %s93
      %s96 = sphi 0, %s95
      %s110 = sphi 0, %s96
      %s116 = sphi 0, %s118
      %s119 = sphi 0, %s116
      %s120 = sphi 0, %s119
      %s136 = sphi 0, %s120
    $region4: #{tpu_custom_call.1} parent=1 // loop_header_branch
      %20 = sbr.rel (%p18) target = $region8
    $region5: #{tpu_custom_call.1} parent=1 // loop_body
      %s22 = ssub.s32 %s17, 1
      %s23 = ssub.s32 %s17, 2
      %s24 = sadd.s32 %s17, 1
      %s25 = ssub.s32 %s17, %s24
      %p26 = scmp.eq.s32.totalorder %s25, 0
      %s28 = sadd.s32 %s27, 1
      %s29 = scalar_select %p26, %s27, %s28
      %p32 = pneg %p26
      %p33 = scmp.eq.s32.totalorder %s17, 1
      %p34 = por %p32, %p33
      %p35 = scmp.ne.s32.totalorder %s27, %s30
      %p36 = scmp.eq.s32.totalorder %s17, 0
      %p37 = por %p35, %p36
      %p38 = scmp.ne.s32.totalorder %s27, %s30
      %p39 = scmp.eq.s32.totalorder %s22, 1
      %p40 = por %p38, %p39
      %p41 = scmp.ne.s32.totalorder %s30, %s31
      %p42 = scmp.eq.s32.totalorder %s22, 0
      %p43 = por %p41, %p42
      %p44 = scmp.ne.s32.totalorder %s30, %s31
      %p45 = scmp.eq.s32.totalorder %s23, 1
      %p46 = por %p44, %p45
      %p48 = scmp.ne.s32.totalorder %s31, %s47
      %p49 = scmp.eq.s32.totalorder %s23, 0
      %p50 = por %p48, %p49
      %s52 = sadd.s32 %s51, 1
      %p55 = scmp.eq.s32.totalorder %s17, 1
      %p56 = scmp.ne.s32.totalorder %s51, %s53
      %p57 = scmp.eq.s32.totalorder %s17, 0
      %p58 = por %p56, %p57
      %p59 = scmp.ne.s32.totalorder %s51, %s53
      %p60 = scmp.eq.s32.totalorder %s22, 1
      %p61 = por %p59, %p60
      %p62 = scmp.ne.s32.totalorder %s53, %s54
      %p63 = scmp.eq.s32.totalorder %s22, 0
      %p64 = por %p62, %p63
      %p65 = scmp.ne.s32.totalorder %s53, %s54
      %p66 = scmp.eq.s32.totalorder %s23, 1
      %p67 = por %p65, %p66
      %p69 = scmp.ne.s32.totalorder %s54, %s68
      %p70 = scmp.eq.s32.totalorder %s23, 0
      %p71 = por %p69, %p70
      %s73 = sadd.s32 %s72, 1
      %p76 = scmp.eq.s32.totalorder %s17, 1
      %p77 = scmp.ne.s32.totalorder %s72, %s74
      %p78 = scmp.eq.s32.totalorder %s17, 0
      %p79 = por %p77, %p78
      %p80 = scmp.ne.s32.totalorder %s72, %s74
      %p81 = scmp.eq.s32.totalorder %s22, 1
      %p82 = por %p80, %p81
      %p83 = scmp.ne.s32.totalorder %s74, %s75
      %p84 = scmp.eq.s32.totalorder %s22, 0
      %p85 = por %p83, %p84
      %p86 = scmp.ne.s32.totalorder %s74, %s75
      %p87 = scmp.eq.s32.totalorder %s23, 1
      %p88 = por %p86, %p87
      %p90 = scmp.ne.s32.totalorder %s75, %s89
      %p91 = scmp.eq.s32.totalorder %s23, 0
      %p92 = por %p90, %p91
      %s94 = sadd.s32 %s93, 1
      %p97 = scmp.eq.s32.totalorder %s17, 1
      %p98 = scmp.ne.s32.totalorder %s93, %s95
      %p99 = scmp.eq.s32.totalorder %s17, 0
      %p100 = por %p98, %p99
      %p101 = scmp.ne.s32.totalorder %s93, %s95
      %p102 = scmp.eq.s32.totalorder %s22, 1
      %p103 = por %p101, %p102
      %p104 = scmp.ne.s32.totalorder %s95, %s96
      %p105 = scmp.eq.s32.totalorder %s22, 0
      %p106 = por %p104, %p105
      %p107 = scmp.ne.s32.totalorder %s95, %s96
      %p108 = scmp.eq.s32.totalorder %s23, 1
      %p109 = por %p107, %p108
      %p111 = scmp.ne.s32.totalorder %s96, %s110
      %p112 = scmp.eq.s32.totalorder %s23, 0
      %p113 = por %p111, %p112
      %s114 = ssub.s32 %s17, %s24
      %p115 = scmp.eq.s32.totalorder %s114, 0
      %s117 = sadd.s32 %s116, 1
      %s118 = scalar_select %p115, %s116, %s117
      %p121 = pneg %p115
      %p122 = scmp.eq.s32.totalorder %s17, 1
      %p123 = por %p121, %p122
      %p124 = scmp.ne.s32.totalorder %s116, %s119
      %p125 = scmp.eq.s32.totalorder %s17, 0
      %p126 = por %p124, %p125
      %p127 = scmp.ne.s32.totalorder %s116, %s119
      %p128 = scmp.eq.s32.totalorder %s22, 1
      %p129 = por %p127, %p128
      %p130 = scmp.ne.s32.totalorder %s119, %s120
      %p131 = scmp.eq.s32.totalorder %s22, 0
      %p132 = por %p130, %p131
      %p133 = scmp.ne.s32.totalorder %s119, %s120
      %p134 = scmp.eq.s32.totalorder %s23, 1
      %p135 = por %p133, %p134
      %p137 = scmp.ne.s32.totalorder %s120, %s136
      %p138 = scmp.eq.s32.totalorder %s23, 0
      %p139 = por %p137, %p138
      %p140 = scmp.le.s32.totalorder 1, %s17
      %p141 = scmp.lt.s32.totalorder %s17, 3
      %p142 = pnand %p140, %p141
      %p143 = pneg %p142
      // Predicated region
      $region9: #{tpu_custom_call.1} parent=5 // pred_check
        _
      $region10: #{tpu_custom_call.1} parent=5 // pred_check_branch
        %145 = sbr.rel (%p142) target = $region12
      $region11: #{tpu_custom_call.1} parent=5 // pred_region
        %s146 = ssub.s32 %s17, 1
        // Predicated region
        $region13: #{tpu_custom_call.1} parent=11 // pred_check
          %p147 = pneg %p64
        $region14: #{tpu_custom_call.1} parent=11 // pred_check_branch
          %149 = sbr.rel (%p147) target = $region16
        $region15: #{tpu_custom_call.1} parent=11 // pred_region
          %s151 = ssub.s32 512, 512
          %152 = vsyncadd [#allocation6], %s151
          %s153 = sshll.u32 [#allocation5], 4
          %s154 = int_to_ptr.vmem [resolvable:$true] %s153
          %159 = dma.hbm_to_vmem [thread:$0]  %s1, 512, %s154, [#allocation6], 128, 128, 8
        $region16: #{tpu_custom_call.1} parent=11 // pred_fallthru
          _
        // Predicated region
        $region17: #{tpu_custom_call.1} parent=11 // pred_check
          %p160 = pneg %p85
        $region18: #{tpu_custom_call.1} parent=11 // pred_check_branch
          %162 = sbr.rel (%p160) target = $region20
        $region19: #{tpu_custom_call.1} parent=11 // pred_region
          %s164 = ssub.s32 512, 512
          %165 = vsyncadd [#allocation6], %s164
          %s166 = sshll.u32 [#allocation7], 4
          %s167 = int_to_ptr.vmem [resolvable:$true] %s166
          %172 = dma.hbm_to_vmem [thread:$0]  %s2, 512, %s167, [#allocation6], 128, 128, 8
        $region20: #{tpu_custom_call.1} parent=11 // pred_fallthru
          _
        // Predicated region
        $region21: #{tpu_custom_call.1} parent=11 // pred_check
          %p173 = pneg %p106
        $region22: #{tpu_custom_call.1} parent=11 // pred_check_branch
          %175 = sbr.rel (%p173) target = $region24
        $region23: #{tpu_custom_call.1} parent=11 // pred_region
          _
        $region24: #{tpu_custom_call.1} parent=11 // pred_fallthru
          _
      $region12: #{tpu_custom_call.1} parent=5 // pred_fallthru
        _
      %p176 = scmp.lt.s32.totalorder %s17, 2
      // Predicated region
      $region25: #{tpu_custom_call.1} parent=5 // pred_check
        %p177 = pneg %p176
      $region26: #{tpu_custom_call.1} parent=5 // pred_check_branch
        %179 = sbr.rel (%p177) target = $region28
      $region27: #{tpu_custom_call.1} parent=5 // pred_region
        // Predicated region
        $region29: #{tpu_custom_call.1} parent=27 // pred_check
          %p180 = pneg %p37
        $region30: #{tpu_custom_call.1} parent=27 // pred_check_branch
          %182 = sbr.rel (%p180) target = $region32
        $region31: #{tpu_custom_call.1} parent=27 // pred_region
          %s183 = sand.u32 %s27, 1
          %s184 = scalar_lea.sflag [#allocation3], %s183
          %s185 = sand.u32 %s27, 1
          %s186 = smul.addr %s185, 8
          %s187 = scalar_lea.vmem [#allocation2], %s186
          %s189 = ssub.s32 128, 128
          %190 = vsyncadd %s184, %s189
          %s191 = smul.addr %s17, 128
          %s192 = scalar_lea.hbm %s0, %s191
          %s194 = sshll.u32 %s187, 4
          %s195 = int_to_ptr.vmem [resolvable:$true] %s194
          %197 = dma.hbm_to_vmem [thread:$0]  %s192, 128, %s195, %s184
        $region32: #{tpu_custom_call.1} parent=27 // pred_fallthru
          _
      $region28: #{tpu_custom_call.1} parent=5 // pred_fallthru
        _
      %p198 = scmp.le.s32.totalorder 1, %s17
      %p199 = scmp.lt.s32.totalorder %s17, 3
      %p200 = pnand %p198, %p199
      %p201 = pneg %p200
      // Predicated region
      $region33: #{tpu_custom_call.1} parent=5 // pred_check
        _
      $region34: #{tpu_custom_call.1} parent=5 // pred_check_branch
        %203 = sbr.rel (%p200) target = $region36
      $region35: #{tpu_custom_call.1} parent=5 // pred_region
        %s204 = ssub.s32 %s17, 1
        %s205 = sand.u32 %s30, 1
        %s206 = scalar_lea.sflag [#allocation3], %s205
        %s207 = sand.u32 %s30, 1
        %s208 = smul.addr %s207, 8
        %s209 = scalar_lea.vmem [#allocation2], %s208
        // Predicated region
        $region37: #{tpu_custom_call.1} parent=35 // pred_check
          %p210 = pneg %p43
        $region38: #{tpu_custom_call.1} parent=35 // pred_check_branch
          %212 = sbr.rel (%p210) target = $region40
        $region39: #{tpu_custom_call.1} parent=35 // pred_region
          %213 = dma.done %s206, 128
        $region40: #{tpu_custom_call.1} parent=35 // pred_fallthru
          _
        // Predicated region
        $region41: #{tpu_custom_call.1} parent=35 // pred_check
          %p214 = pneg %p64
        $region42: #{tpu_custom_call.1} parent=35 // pred_check_branch
          %216 = sbr.rel (%p214) target = $region44
        $region43: #{tpu_custom_call.1} parent=35 // pred_region
          %217 = dma.done [#allocation6], 512
        $region44: #{tpu_custom_call.1} parent=35 // pred_fallthru
          _
        // Predicated region
        $region45: #{tpu_custom_call.1} parent=35 // pred_check
          %p218 = pneg %p85
        $region46: #{tpu_custom_call.1} parent=35 // pred_check_branch
          %220 = sbr.rel (%p218) target = $region48
        $region47: #{tpu_custom_call.1} parent=35 // pred_region
          %221 = dma.done [#allocation6], 512
        $region48: #{tpu_custom_call.1} parent=35 // pred_fallthru
          _
        %s222 = sand.u32 %s30, 1
        %s223 = scalar_lea.sflag [#allocation3], %s222
        %s224 = sand.u32 %s30, 1
        %s225 = smul.addr %s224, 8
        %s226 = scalar_lea.vmem [#allocation2], %s225
        %p227 = pneg %p43
        %p228 = pneg %p40
        %p229 = pneg %p64
        %p230 = pneg %p61
        %p231 = pneg %p85
        %p232 = pneg %p82
        %p233 = pneg %p106
        %p234 = pneg %p103
        %p235 = pneg %p132
        %p236 = pneg %p129
        %s237 = sand.u32 %s119, 1
        %s238 = scalar_lea.sflag [#allocation4], %s237
        %s239 = sand.u32 %s119, 1
        %s240 = smul.addr %s239, 8
        %s241 = scalar_lea.vmem [#allocation8], %s240
        %v242 = vld [vmem:[%s209] sm:$0xff]
        %v243 = vld [vmem:[#allocation5] sm:$0xff]
        %v244 = vld [vmem:[#allocation5 + $0x8] sm:$0xff]
        %v245 = vld [vmem:[#allocation5 + $0x10] sm:$0xff]
        %v246 = vld [vmem:[#allocation5 + $0x18] sm:$0xff]
        %vm247 = vcmask 261120
        %v249 = vsel %vm247, %v242, 0
        %251 = vmatprep.subr.mxu0 0.0
        %252 = vmatpush1.msra.mxu0 %v243
        %253 = vmatprep.subr.mxu0 0.0
        %254 = vmatpush1.msra.mxu0 %v244
        %255 = vmatprep.subr.mxu0 0.0
        %256 = vmatpush1.msra.mxu0 %v245
        %257 = vmatprep.subr.mxu0 0.0
        %258 = vmatpush1.msra.mxu0 %v246
        %259 = vmatprep.subr.mxu0 0.0
        %260 = vmatpush1.msra.mxu0 0.0
        %261 = vmatprep.subr.mxu0 0.0
        %262 = vmatpush1.msra.mxu0 0.0
        %263 = vmatprep.subr.mxu0 0.0
        %264 = vmatpush1.msra.mxu0 0.0
        %265 = vmatprep.subr.mxu0 0.0
        %266 = vmatpush1.msra.mxu0 0.0
        %267 = vmatprep.subr.mxu0 0.0
        %268 = vmatpush1.msra.mxu0 0.0
        %269 = vmatprep.subr.mxu0 0.0
        %270 = vmatpush1.msra.mxu0 0.0
        %271 = vmatprep.subr.mxu0 0.0
        %272 = vmatpush1.msra.mxu0 0.0
        %273 = vmatprep.subr.mxu0 0.0
        %274 = vmatpush1.msra.mxu0 0.0
        %275 = vmatprep.subr.mxu0 0.0
        %276 = vmatpush1.msra.mxu0 0.0
        %277 = vmatprep.subr.mxu0 0.0
        %278 = vmatpush1.msra.mxu0 0.0
        %279 = vmatprep.subr.mxu0 0.0
        %280 = vmatpush1.msra.mxu0 0.0
        %281 = vmatprep.subr.mxu0 0.0
        %282 = vmatpush1.msra.mxu0 0.0
        %283 = vmatprep.subr.mxu0 0.0
        %284 = vmatpush1.msra.mxu0 0.0
        %285 = vmatprep.subr.mxu0 0.0
        %286 = vmatpush1.msra.mxu0 0.0
        %287 = vmatprep.subr.mxu0 0.0
        %288 = vmatpush1.msra.mxu0 0.0
        %289 = vmatprep.subr.mxu0 0.0
        %290 = vmatpush1.msra.mxu0 0.0
        %291 = vmatprep.subr.mxu0 0.0
        %292 = vmatpush1.msra.mxu0 0.0
        %293 = vmatprep.subr.mxu0 0.0
        %294 = vmatpush1.msra.mxu0 0.0
        %295 = vmatprep.subr.mxu0 0.0
        %296 = vmatpush1.msra.mxu0 0.0
        %297 = vmatprep.subr.mxu0 0.0
        %298 = vmatpush1.msra.mxu0 0.0
        %299 = vmatprep.subr.mxu0 0.0
        %300 = vmatpush1.msra.mxu0 0.0
        %301 = vmatprep.subr.mxu0 0.0
        %302 = vmatpush1.msra.mxu0 0.0
        %303 = vmatprep.subr.mxu0 0.0
        %304 = vmatpush1.msra.mxu0 0.0
        %305 = vmatprep.subr.mxu0 0.0
        %306 = vmatpush1.msra.mxu0 0.0
        %307 = vmatprep.subr.mxu0 0.0
        %308 = vmatpush1.msra.mxu0 0.0
        %309 = vmatprep.subr.mxu0 0.0
        %310 = vmatpush1.msra.mxu0 0.0
        %311 = vmatprep.subr.mxu0 0.0
        %312 = vmatpush1.msra.mxu0 0.0
        %313 = vmatprep.subr.mxu0 0.0
        %314 = vmatpush1.msra.mxu0 0.0
        %315 = vmatprep.mubr.f32.mxu0 0.0
        %316 = vmatmul.mubr.f32.gmra.mrb[0].mxu0 %v249
        %v317 = vpop.f32.mrb[0].mxu0
        %v318 = vadd.f32 0.0, %v317
        %v319 = vpop.f32.mrb[0].mxu0
        %320 = vdwg.mxu0
        %v321 = vld [vmem:[#allocation7] sm:$0xff]
        %v322 = vld [vmem:[#allocation7 + $0x8] sm:$0xff]
        %v323 = vld [vmem:[#allocation7 + $0x10] sm:$0xff]
        %v324 = vld [vmem:[#allocation7 + $0x18] sm:$0xff]
        %325 = vmatprep.subr.mxu0 0.0
        %326 = vmatpush1.msra.mxu0 %v321
        %327 = vmatprep.subr.mxu0 0.0
        %328 = vmatpush1.msra.mxu0 %v322
        %329 = vmatprep.subr.mxu0 0.0
        %330 = vmatpush1.msra.mxu0 %v323
        %331 = vmatprep.subr.mxu0 0.0
        %332 = vmatpush1.msra.mxu0 %v324
        %333 = vmatprep.subr.mxu0 0.0
        %334 = vmatpush1.msra.mxu0 0.0
        %335 = vmatprep.subr.mxu0 0.0
        %336 = vmatpush1.msra.mxu0 0.0
        %337 = vmatprep.subr.mxu0 0.0
        %338 = vmatpush1.msra.mxu0 0.0
        %339 = vmatprep.subr.mxu0 0.0
        %340 = vmatpush1.msra.mxu0 0.0
        %341 = vmatprep.subr.mxu0 0.0
        %342 = vmatpush1.msra.mxu0 0.0
        %343 = vmatprep.subr.mxu0 0.0
        %344 = vmatpush1.msra.mxu0 0.0
        %345 = vmatprep.subr.mxu0 0.0
        %346 = vmatpush1.msra.mxu0 0.0
        %347 = vmatprep.subr.mxu0 0.0
        %348 = vmatpush1.msra.mxu0 0.0
        %349 = vmatprep.subr.mxu0 0.0
        %350 = vmatpush1.msra.mxu0 0.0
        %351 = vmatprep.subr.mxu0 0.0
        %352 = vmatpush1.msra.mxu0 0.0
        %353 = vmatprep.subr.mxu0 0.0
        %354 = vmatpush1.msra.mxu0 0.0
        %355 = vmatprep.subr.mxu0 0.0
        %356 = vmatpush1.msra.mxu0 0.0
        %357 = vmatprep.subr.mxu0 0.0
        %358 = vmatpush1.msra.mxu0 0.0
        %359 = vmatprep.subr.mxu0 0.0
        %360 = vmatpush1.msra.mxu0 0.0
        %361 = vmatprep.subr.mxu0 0.0
        %362 = vmatpush1.msra.mxu0 0.0
        %363 = vmatprep.subr.mxu0 0.0
        %364 = vmatpush1.msra.mxu0 0.0
        %365 = vmatprep.subr.mxu0 0.0
        %366 = vmatpush1.msra.mxu0 0.0
        %367 = vmatprep.subr.mxu0 0.0
        %368 = vmatpush1.msra.mxu0 0.0
        %369 = vmatprep.subr.mxu0 0.0
        %370 = vmatpush1.msra.mxu0 0.0
        %371 = vmatprep.subr.mxu0 0.0
        %372 = vmatpush1.msra.mxu0 0.0
        %373 = vmatprep.subr.mxu0 0.0
        %374 = vmatpush1.msra.mxu0 0.0
        %375 = vmatprep.subr.mxu0 0.0
        %376 = vmatpush1.msra.mxu0 0.0
        %377 = vmatprep.subr.mxu0 0.0
        %378 = vmatpush1.msra.mxu0 0.0
        %379 = vmatprep.subr.mxu0 0.0
        %380 = vmatpush1.msra.mxu0 0.0
        %381 = vmatprep.subr.mxu0 0.0
        %382 = vmatpush1.msra.mxu0 0.0
        %383 = vmatprep.subr.mxu0 0.0
        %384 = vmatpush1.msra.mxu0 0.0
        %385 = vmatprep.subr.mxu0 0.0
        %386 = vmatpush1.msra.mxu0 0.0
        %387 = vmatprep.subr.mxu0 0.0
        %388 = vmatpush1.msra.mxu0 0.0
        %389 = vmatprep.mubr.f32.mxu0 0.0
        %390 = vmatmul.mubr.f32.gmra.mrb[0].mxu0 %v249
        %v391 = vpop.f32.mrb[0].mxu0
        %v392 = vadd.f32 0.0, %v391
        %v393 = vpop.f32.mrb[0].mxu0
        %394 = vdwg.mxu0
        %v395 = vlaneseq
        %v396 = vshrl.u32 %v395, 7
        %v397 = vlaneseq
        %v398 = vand.u32 %v397, 127
        %vm399 = vcmp.le.s32.totalorder %v398, %v396
        %v400 = vsel %vm399, 0.0, -1e+30
        %402 = vrot.lane.b32.xlu0 %v318, 96
        %v403 = vpop.permute.xlu0 %402
        %vm404 = vcmask 64512
        %v405 = vsel %vm404, %v318, 0
        %v407 = vsel %vm404, %v403, 0
        %409 = vmatprep.subr.mxu0 0.0
        %410 = vmatpush1.xpose.msra.mxu0 %v407
        %411 = vmatprep.subr.mxu0 0.0
        %412 = vmatpush1.xpose.msra.mxu0 0.0
        %413 = vmatprep.subr.mxu0 0.0
        %414 = vmatpush1.xpose.msra.mxu0 0.0
        %415 = vmatprep.subr.mxu0 0.0
        %416 = vmatpush1.xpose.msra.mxu0 0.0
        %417 = vmatprep.subr.mxu0 0.0
        %418 = vmatpush1.xpose.msra.mxu0 0.0
        %419 = vmatprep.subr.mxu0 0.0
        %420 = vmatpush1.xpose.msra.mxu0 0.0
        %421 = vmatprep.subr.mxu0 0.0
        %422 = vmatpush1.xpose.msra.mxu0 0.0
        %423 = vmatprep.subr.mxu0 0.0
        %424 = vmatpush1.xpose.msra.mxu0 0.0
        %425 = vmatprep.subr.mxu0 0.0
        %426 = vmatpush1.xpose.msra.mxu0 0.0
        %427 = vmatprep.subr.mxu0 0.0
        %428 = vmatpush1.xpose.msra.mxu0 0.0
        %429 = vmatprep.subr.mxu0 0.0
        %430 = vmatpush1.xpose.msra.mxu0 0.0
        %431 = vmatprep.subr.mxu0 0.0
        %432 = vmatpush1.xpose.msra.mxu0 0.0
        %433 = vmatprep.subr.mxu0 0.0
        %434 = vmatpush1.xpose.msra.mxu0 0.0
        %435 = vmatprep.subr.mxu0 0.0
        %436 = vmatpush1.xpose.msra.mxu0 0.0
        %437 = vmatprep.subr.mxu0 0.0
        %438 = vmatpush1.xpose.msra.mxu0 0.0
        %439 = vmatprep.subr.mxu0 0.0
        %440 = vmatpush1.xpose.msra.mxu0 0.0
        %441 = vmatprep.subr.mxu0 0.0
        %442 = vmatpush1.xpose.msra.mxu0 0.0
        %443 = vmatprep.subr.mxu0 0.0
        %444 = vmatpush1.xpose.msra.mxu0 0.0
        %445 = vmatprep.subr.mxu0 0.0
        %446 = vmatpush1.xpose.msra.mxu0 0.0
        %447 = vmatprep.subr.mxu0 0.0
        %448 = vmatpush1.xpose.msra.mxu0 0.0
        %449 = vmatprep.subr.mxu0 0.0
        %450 = vmatpush1.xpose.msra.mxu0 0.0
        %451 = vmatprep.subr.mxu0 0.0
        %452 = vmatpush1.xpose.msra.mxu0 0.0
        %453 = vmatprep.subr.mxu0 0.0
        %454 = vmatpush1.xpose.msra.mxu0 0.0
        %455 = vmatprep.subr.mxu0 0.0
        %456 = vmatpush1.xpose.msra.mxu0 0.0
        %457 = vmatprep.subr.mxu0 0.0
        %458 = vmatpush1.xpose.msra.mxu0 0.0
        %459 = vmatprep.subr.mxu0 0.0
        %460 = vmatpush1.xpose.msra.mxu0 0.0
        %461 = vmatprep.subr.mxu0 0.0
        %462 = vmatpush1.xpose.msra.mxu0 0.0
        %463 = vmatprep.subr.mxu0 0.0
        %464 = vmatpush1.xpose.msra.mxu0 0.0
        %465 = vmatprep.subr.mxu0 0.0
        %466 = vmatpush1.xpose.msra.mxu0 0.0
        %467 = vmatprep.subr.mxu0 0.0
        %468 = vmatpush1.xpose.msra.mxu0 0.0
        %469 = vmatprep.subr.mxu0 0.0
        %470 = vmatpush1.xpose.msra.mxu0 0.0
        %471 = vmatprep.subr.mxu0 0.0
        %472 = vmatpush1.xpose.msra.mxu0 0.0
        %473 = vmatprep.mubr.f32.mxu0 0.0
        %474 = vmatmul.mubr.f32.gmra.mrb[0].mxu0 %v405
        %v475 = vpop.f32.mrb[0].mxu0
        %v476 = vadd.f32 %v400, %v475
        %v477 = vpop.f32.mrb[0].mxu0
        %478 = vdwg.mxu0
        %v479 = vsel %vm404, %v476, -inf
        %480 = vmax.xlane.f32.xlu0 %v479
        %v481 = vpop.xlane.xlu0 %480
        %v482 = vsub.f32 %v476, %v481
        %v483 = vmul.f32 %v482, 1.442695
        %v484 = vpow.pop %v483
        %v485 = vsel %vm404, %v484, 0.0
        %486 = vadd.xlane.f32.xlu0 %v485
        %v487 = vpop.xlane.xlu0 %486
        %v488 = vrcp.pop %v487
        %v489 = vmul.f32 %v487, %v488
        %v490 = vsub.f32 2.0, %v489
        %v491 = vmul.f32 %v488, %v490
        %v492 = vmul.f32 %v484, %v491
        %493 = vrot.lane.b32.xlu0 %v318, 120
        %v494 = vpop.permute.xlu0 %493
        %495 = vrot.lane.b32.xlu0 %v318, 88
        %v496 = vpop.permute.xlu0 %495
        %v497 = vsel %vm404, %v494, 0
        %v499 = vsel %vm404, %v496, 0
        %501 = vmatprep.subr.mxu0 0.0
        %502 = vmatpush1.xpose.msra.mxu0 %v499
        %503 = vmatprep.subr.mxu0 0.0
        %504 = vmatpush1.xpose.msra.mxu0 0.0
        %505 = vmatprep.subr.mxu0 0.0
        %506 = vmatpush1.xpose.msra.mxu0 0.0
        %507 = vmatprep.subr.mxu0 0.0
        %508 = vmatpush1.xpose.msra.mxu0 0.0
        %509 = vmatprep.subr.mxu0 0.0
        %510 = vmatpush1.xpose.msra.mxu0 0.0
        %511 = vmatprep.subr.mxu0 0.0
        %512 = vmatpush1.xpose.msra.mxu0 0.0
        %513 = vmatprep.subr.mxu0 0.0
        %514 = vmatpush1.xpose.msra.mxu0 0.0
        %515 = vmatprep.subr.mxu0 0.0
        %516 = vmatpush1.xpose.msra.mxu0 0.0
        %517 = vmatprep.subr.mxu0 0.0
        %518 = vmatpush1.xpose.msra.mxu0 0.0
        %519 = vmatprep.subr.mxu0 0.0
        %520 = vmatpush1.xpose.msra.mxu0 0.0
        %521 = vmatprep.subr.mxu0 0.0
        %522 = vmatpush1.xpose.msra.mxu0 0.0
        %523 = vmatprep.subr.mxu0 0.0
        %524 = vmatpush1.xpose.msra.mxu0 0.0
        %525 = vmatprep.subr.mxu0 0.0
        %526 = vmatpush1.xpose.msra.mxu0 0.0
        %527 = vmatprep.subr.mxu0 0.0
        %528 = vmatpush1.xpose.msra.mxu0 0.0
        %529 = vmatprep.subr.mxu0 0.0
        %530 = vmatpush1.xpose.msra.mxu0 0.0
        %531 = vmatprep.subr.mxu0 0.0
        %532 = vmatpush1.xpose.msra.mxu0 0.0
        %533 = vmatprep.subr.mxu0 0.0
        %534 = vmatpush1.xpose.msra.mxu0 0.0
        %535 = vmatprep.subr.mxu0 0.0
        %536 = vmatpush1.xpose.msra.mxu0 0.0
        %537 = vmatprep.subr.mxu0 0.0
        %538 = vmatpush1.xpose.msra.mxu0 0.0
        %539 = vmatprep.subr.mxu0 0.0
        %540 = vmatpush1.xpose.msra.mxu0 0.0
        %541 = vmatprep.subr.mxu0 0.0
        %542 = vmatpush1.xpose.msra.mxu0 0.0
        %543 = vmatprep.subr.mxu0 0.0
        %544 = vmatpush1.xpose.msra.mxu0 0.0
        %545 = vmatprep.subr.mxu0 0.0
        %546 = vmatpush1.xpose.msra.mxu0 0.0
        %547 = vmatprep.subr.mxu0 0.0
        %548 = vmatpush1.xpose.msra.mxu0 0.0
        %549 = vmatprep.subr.mxu0 0.0
        %550 = vmatpush1.xpose.msra.mxu0 0.0
        %551 = vmatprep.subr.mxu0 0.0
        %552 = vmatpush1.xpose.msra.mxu0 0.0
        %553 = vmatprep.subr.mxu0 0.0
        %554 = vmatpush1.xpose.msra.mxu0 0.0
        %555 = vmatprep.subr.mxu0 0.0
        %556 = vmatpush1.xpose.msra.mxu0 0.0
        %557 = vmatprep.subr.mxu0 0.0
        %558 = vmatpush1.xpose.msra.mxu0 0.0
        %559 = vmatprep.subr.mxu0 0.0
        %560 = vmatpush1.xpose.msra.mxu0 0.0
        %561 = vmatprep.subr.mxu0 0.0
        %562 = vmatpush1.xpose.msra.mxu0 0.0
        %563 = vmatprep.subr.mxu0 0.0
        %564 = vmatpush1.xpose.msra.mxu0 0.0
        %565 = vmatprep.mubr.f32.mxu0 0.0
        %566 = vmatmul.mubr.f32.gmra.mrb[0].mxu0 %v497
        %v567 = vpop.f32.mrb[0].mxu0
        %v568 = vadd.f32 %v400, %v567
        %v569 = vpop.f32.mrb[0].mxu0
        %570 = vdwg.mxu0
        %v571 = vsel %vm404, %v568, -inf
        %572 = vmax.xlane.f32.xlu0 %v571
        %v573 = vpop.xlane.xlu0 %572
        %v574 = vsub.f32 %v568, %v573
        %v575 = vmul.f32 %v574, 1.442695
        %v576 = vpow.pop %v575
        %v577 = vsel %vm404, %v576, 0.0
        %578 = vadd.xlane.f32.xlu0 %v577
        %v579 = vpop.xlane.xlu0 %578
        %v580 = vrcp.pop %v579
        %v581 = vmul.f32 %v579, %v580
        %v582 = vsub.f32 2.0, %v581
        %v583 = vmul.f32 %v580, %v582
        %v584 = vmul.f32 %v576, %v583
        %586 = vrot.lane.b32.xlu0 %v392, 96
        %v587 = vpop.permute.xlu0 %586
        %v590 = vsel %vm404, %v584, 0
        %592 = vmatprep.subr.mxu0 0.0
        %593 = vmatpush1.msra.mxu0 %v587
        %594 = vmatprep.subr.mxu0 0.0
        %595 = vmatpush1.msra.mxu0 0.0
        %596 = vmatprep.subr.mxu0 0.0
        %597 = vmatpush1.msra.mxu0 0.0
        %598 = vmatprep.subr.mxu0 0.0
        %599 = vmatpush1.msra.mxu0 0.0
        %600 = vmatprep.subr.mxu0 0.0
        %601 = vmatpush1.msra.mxu0 0.0
        %602 = vmatprep.subr.mxu0 0.0
        %603 = vmatpush1.msra.mxu0 0.0
        %604 = vmatprep.subr.mxu0 0.0
        %605 = vmatpush1.msra.mxu0 0.0
        %606 = vmatprep.subr.mxu0 0.0
        %607 = vmatpush1.msra.mxu0 0.0
        %608 = vmatprep.subr.mxu0 0.0
        %609 = vmatpush1.msra.mxu0 0.0
        %610 = vmatprep.subr.mxu0 0.0
        %611 = vmatpush1.msra.mxu0 0.0
        %612 = vmatprep.subr.mxu0 0.0
        %613 = vmatpush1.msra.mxu0 0.0
        %614 = vmatprep.subr.mxu0 0.0
        %615 = vmatpush1.msra.mxu0 0.0
        %616 = vmatprep.subr.mxu0 0.0
        %617 = vmatpush1.msra.mxu0 0.0
        %618 = vmatprep.subr.mxu0 0.0
        %619 = vmatpush1.msra.mxu0 0.0
        %620 = vmatprep.subr.mxu0 0.0
        %621 = vmatpush1.msra.mxu0 0.0
        %622 = vmatprep.subr.mxu0 0.0
        %623 = vmatpush1.msra.mxu0 0.0
        %624 = vmatprep.subr.mxu0 0.0
        %625 = vmatpush1.msra.mxu0 0.0
        %626 = vmatprep.subr.mxu0 0.0
        %627 = vmatpush1.msra.mxu0 0.0
        %628 = vmatprep.subr.mxu0 0.0
        %629 = vmatpush1.msra.mxu0 0.0
        %630 = vmatprep.subr.mxu0 0.0
        %631 = vmatpush1.msra.mxu0 0.0
        %632 = vmatprep.subr.mxu0 0.0
        %633 = vmatpush1.msra.mxu0 0.0
        %634 = vmatprep.subr.mxu0 0.0
        %635 = vmatpush1.msra.mxu0 0.0
        %636 = vmatprep.subr.mxu0 0.0
        %637 = vmatpush1.msra.mxu0 0.0
        %638 = vmatprep.subr.mxu0 0.0
        %639 = vmatpush1.msra.mxu0 0.0
        %640 = vmatprep.subr.mxu0 0.0
        %641 = vmatpush1.msra.mxu0 0.0
        %642 = vmatprep.subr.mxu0 0.0
        %643 = vmatpush1.msra.mxu0 0.0
        %644 = vmatprep.subr.mxu0 0.0
        %645 = vmatpush1.msra.mxu0 0.0
        %646 = vmatprep.subr.mxu0 0.0
        %647 = vmatpush1.msra.mxu0 0.0
        %648 = vmatprep.subr.mxu0 0.0
        %649 = vmatpush1.msra.mxu0 0.0
        %650 = vmatprep.subr.mxu0 0.0
        %651 = vmatpush1.msra.mxu0 0.0
        %652 = vmatprep.subr.mxu0 0.0
        %653 = vmatpush1.msra.mxu0 0.0
        %654 = vmatprep.subr.mxu0 0.0
        %655 = vmatpush1.msra.mxu0 0.0
        %656 = vmatprep.mubr.f32.mxu0 0.0
        %657 = vmatmul.mubr.f32.gmra.mrb[0].mxu0 %v590
        %v658 = vpop.f32.mrb[0].mxu0
        %v659 = vadd.f32 0.0, %v658
        %v660 = vpop.f32.mrb[0].mxu0
        %661 = vdwg.mxu0
        %v663 = vsel %vm404, %v492, 0
        %665 = vmatprep.subr.mxu0 0.0
        %666 = vmatpush1.msra.mxu0 %v392
        %667 = vmatprep.subr.mxu0 0.0
        %668 = vmatpush1.msra.mxu0 0.0
        %669 = vmatprep.subr.mxu0 0.0
        %670 = vmatpush1.msra.mxu0 0.0
        %671 = vmatprep.subr.mxu0 0.0
        %672 = vmatpush1.msra.mxu0 0.0
        %673 = vmatprep.subr.mxu0 0.0
        %674 = vmatpush1.msra.mxu0 0.0
        %675 = vmatprep.subr.mxu0 0.0
        %676 = vmatpush1.msra.mxu0 0.0
        %677 = vmatprep.subr.mxu0 0.0
        %678 = vmatpush1.msra.mxu0 0.0
        %679 = vmatprep.subr.mxu0 0.0
        %680 = vmatpush1.msra.mxu0 0.0
        %681 = vmatprep.subr.mxu0 0.0
        %682 = vmatpush1.msra.mxu0 0.0
        %683 = vmatprep.subr.mxu0 0.0
        %684 = vmatpush1.msra.mxu0 0.0
        %685 = vmatprep.subr.mxu0 0.0
        %686 = vmatpush1.msra.mxu0 0.0
        %687 = vmatprep.subr.mxu0 0.0
        %688 = vmatpush1.msra.mxu0 0.0
        %689 = vmatprep.subr.mxu0 0.0
        %690 = vmatpush1.msra.mxu0 0.0
        %691 = vmatprep.subr.mxu0 0.0
        %692 = vmatpush1.msra.mxu0 0.0
        %693 = vmatprep.subr.mxu0 0.0
        %694 = vmatpush1.msra.mxu0 0.0
        %695 = vmatprep.subr.mxu0 0.0
        %696 = vmatpush1.msra.mxu0 0.0
        %697 = vmatprep.subr.mxu0 0.0
        %698 = vmatpush1.msra.mxu0 0.0
        %699 = vmatprep.subr.mxu0 0.0
        %700 = vmatpush1.msra.mxu0 0.0
        %701 = vmatprep.subr.mxu0 0.0
        %702 = vmatpush1.msra.mxu0 0.0
        %703 = vmatprep.subr.mxu0 0.0
        %704 = vmatpush1.msra.mxu0 0.0
        %705 = vmatprep.subr.mxu0 0.0
        %706 = vmatpush1.msra.mxu0 0.0
        %707 = vmatprep.subr.mxu0 0.0
        %708 = vmatpush1.msra.mxu0 0.0
        %709 = vmatprep.subr.mxu0 0.0
        %710 = vmatpush1.msra.mxu0 0.0
        %711 = vmatprep.subr.mxu0 0.0
        %712 = vmatpush1.msra.mxu0 0.0
        %713 = vmatprep.subr.mxu0 0.0
        %714 = vmatpush1.msra.mxu0 0.0
        %715 = vmatprep.subr.mxu0 0.0
        %716 = vmatpush1.msra.mxu0 0.0
        %717 = vmatprep.subr.mxu0 0.0
        %718 = vmatpush1.msra.mxu0 0.0
        %719 = vmatprep.subr.mxu0 0.0
        %720 = vmatpush1.msra.mxu0 0.0
        %721 = vmatprep.subr.mxu0 0.0
        %722 = vmatpush1.msra.mxu0 0.0
        %723 = vmatprep.subr.mxu0 0.0
        %724 = vmatpush1.msra.mxu0 0.0
        %725 = vmatprep.subr.mxu0 0.0
        %726 = vmatpush1.msra.mxu0 0.0
        %727 = vmatprep.subr.mxu0 0.0
        %728 = vmatpush1.msra.mxu0 0.0
        %729 = vmatprep.mubr.f32.mxu0 0.0
        %730 = vmatmul.mubr.f32.gmra.mrb[0].mxu0 %v663
        %v731 = vpop.f32.mrb[0].mxu0
        %v732 = vadd.f32 %v659, %v731
        %v733 = vpop.f32.mrb[0].mxu0
        %734 = vdwg.mxu0
        %735 = vrot.lane.b32.xlu0 %v318, 112
        %v736 = vpop.permute.xlu0 %735
        %737 = vrot.lane.b32.xlu0 %v318, 80
        %v738 = vpop.permute.xlu0 %737
        %v739 = vsel %vm404, %v736, 0
        %v741 = vsel %vm404, %v738, 0
        %743 = vmatprep.subr.mxu0 0.0
        %744 = vmatpush1.xpose.msra.mxu0 %v741
        %745 = vmatprep.subr.mxu0 0.0
        %746 = vmatpush1.xpose.msra.mxu0 0.0
        %747 = vmatprep.subr.mxu0 0.0
        %748 = vmatpush1.xpose.msra.mxu0 0.0
        %749 = vmatprep.subr.mxu0 0.0
        %750 = vmatpush1.xpose.msra.mxu0 0.0
        %751 = vmatprep.subr.mxu0 0.0
        %752 = vmatpush1.xpose.msra.mxu0 0.0
        %753 = vmatprep.subr.mxu0 0.0
        %754 = vmatpush1.xpose.msra.mxu0 0.0
        %755 = vmatprep.subr.mxu0 0.0
        %756 = vmatpush1.xpose.msra.mxu0 0.0
        %757 = vmatprep.subr.mxu0 0.0
        %758 = vmatpush1.xpose.msra.mxu0 0.0
        %759 = vmatprep.subr.mxu0 0.0
        %760 = vmatpush1.xpose.msra.mxu0 0.0
        %761 = vmatprep.subr.mxu0 0.0
        %762 = vmatpush1.xpose.msra.mxu0 0.0
        %763 = vmatprep.subr.mxu0 0.0
        %764 = vmatpush1.xpose.msra.mxu0 0.0
        %765 = vmatprep.subr.mxu0 0.0
        %766 = vmatpush1.xpose.msra.mxu0 0.0
        %767 = vmatprep.subr.mxu0 0.0
        %768 = vmatpush1.xpose.msra.mxu0 0.0
        %769 = vmatprep.subr.mxu0 0.0
        %770 = vmatpush1.xpose.msra.mxu0 0.0
        %771 = vmatprep.subr.mxu0 0.0
        %772 = vmatpush1.xpose.msra.mxu0 0.0
        %773 = vmatprep.subr.mxu0 0.0
        %774 = vmatpush1.xpose.msra.mxu0 0.0
        %775 = vmatprep.subr.mxu0 0.0
        %776 = vmatpush1.xpose.msra.mxu0 0.0
        %777 = vmatprep.subr.mxu0 0.0
        %778 = vmatpush1.xpose.msra.mxu0 0.0
        %779 = vmatprep.subr.mxu0 0.0
        %780 = vmatpush1.xpose.msra.mxu0 0.0
        %781 = vmatprep.subr.mxu0 0.0
        %782 = vmatpush1.xpose.msra.mxu0 0.0
        %783 = vmatprep.subr.mxu0 0.0
        %784 = vmatpush1.xpose.msra.mxu0 0.0
        %785 = vmatprep.subr.mxu0 0.0
        %786 = vmatpush1.xpose.msra.mxu0 0.0
        %787 = vmatprep.subr.mxu0 0.0
        %788 = vmatpush1.xpose.msra.mxu0 0.0
        %789 = vmatprep.subr.mxu0 0.0
        %790 = vmatpush1.xpose.msra.mxu0 0.0
        %791 = vmatprep.subr.mxu0 0.0
        %792 = vmatpush1.xpose.msra.mxu0 0.0
        %793 = vmatprep.subr.mxu0 0.0
        %794 = vmatpush1.xpose.msra.mxu0 0.0
        %795 = vmatprep.subr.mxu0 0.0
        %796 = vmatpush1.xpose.msra.mxu0 0.0
        %797 = vmatprep.subr.mxu0 0.0
        %798 = vmatpush1.xpose.msra.mxu0 0.0
        %799 = vmatprep.subr.mxu0 0.0
        %800 = vmatpush1.xpose.msra.mxu0 0.0
        %801 = vmatprep.subr.mxu0 0.0
        %802 = vmatpush1.xpose.msra.mxu0 0.0
        %803 = vmatprep.subr.mxu0 0.0
        %804 = vmatpush1.xpose.msra.mxu0 0.0
        %805 = vmatprep.subr.mxu0 0.0
        %806 = vmatpush1.xpose.msra.mxu0 0.0
        %807 = vmatprep.mubr.f32.mxu0 0.0
        %808 = vmatmul.mubr.f32.gmra.mrb[0].mxu0 %v739
        %v809 = vpop.f32.mrb[0].mxu0
        %v810 = vadd.f32 %v400, %v809
        %v811 = vpop.f32.mrb[0].mxu0
        %812 = vdwg.mxu0
        %v813 = vsel %vm404, %v810, -inf
        %814 = vmax.xlane.f32.xlu0 %v813
        %v815 = vpop.xlane.xlu0 %814
        %v816 = vsub.f32 %v810, %v815
        %v817 = vmul.f32 %v816, 1.442695
        %v818 = vpow.pop %v817
        %v819 = vsel %vm404, %v818, 0.0
        %820 = vadd.xlane.f32.xlu0 %v819
        %v821 = vpop.xlane.xlu0 %820
        %v822 = vrcp.pop %v821
        %v823 = vmul.f32 %v821, %v822
        %v824 = vsub.f32 2.0, %v823
        %v825 = vmul.f32 %v822, %v824
        %v826 = vmul.f32 %v818, %v825
        %827 = vrot.lane.b32.xlu0 %v392, 64
        %v828 = vpop.permute.xlu0 %827
        %v831 = vsel %vm404, %v826, 0
        %833 = vmatprep.subr.mxu0 0.0
        %834 = vmatpush1.msra.mxu0 %v828
        %835 = vmatprep.subr.mxu0 0.0
        %836 = vmatpush1.msra.mxu0 0.0
        %837 = vmatprep.subr.mxu0 0.0
        %838 = vmatpush1.msra.mxu0 0.0
        %839 = vmatprep.subr.mxu0 0.0
        %840 = vmatpush1.msra.mxu0 0.0
        %841 = vmatprep.subr.mxu0 0.0
        %842 = vmatpush1.msra.mxu0 0.0
        %843 = vmatprep.subr.mxu0 0.0
        %844 = vmatpush1.msra.mxu0 0.0
        %845 = vmatprep.subr.mxu0 0.0
        %846 = vmatpush1.msra.mxu0 0.0
        %847 = vmatprep.subr.mxu0 0.0
        %848 = vmatpush1.msra.mxu0 0.0
        %849 = vmatprep.subr.mxu0 0.0
        %850 = vmatpush1.msra.mxu0 0.0
        %851 = vmatprep.subr.mxu0 0.0
        %852 = vmatpush1.msra.mxu0 0.0
        %853 = vmatprep.subr.mxu0 0.0
        %854 = vmatpush1.msra.mxu0 0.0
        %855 = vmatprep.subr.mxu0 0.0
        %856 = vmatpush1.msra.mxu0 0.0
        %857 = vmatprep.subr.mxu0 0.0
        %858 = vmatpush1.msra.mxu0 0.0
        %859 = vmatprep.subr.mxu0 0.0
        %860 = vmatpush1.msra.mxu0 0.0
        %861 = vmatprep.subr.mxu0 0.0
        %862 = vmatpush1.msra.mxu0 0.0
        %863 = vmatprep.subr.mxu0 0.0
        %864 = vmatpush1.msra.mxu0 0.0
        %865 = vmatprep.subr.mxu0 0.0
        %866 = vmatpush1.msra.mxu0 0.0
        %867 = vmatprep.subr.mxu0 0.0
        %868 = vmatpush1.msra.mxu0 0.0
        %869 = vmatprep.subr.mxu0 0.0
        %870 = vmatpush1.msra.mxu0 0.0
        %871 = vmatprep.subr.mxu0 0.0
        %872 = vmatpush1.msra.mxu0 0.0
        %873 = vmatprep.subr.mxu0 0.0
        %874 = vmatpush1.msra.mxu0 0.0
        %875 = vmatprep.subr.mxu0 0.0
        %876 = vmatpush1.msra.mxu0 0.0
        %877 = vmatprep.subr.mxu0 0.0
        %878 = vmatpush1.msra.mxu0 0.0
        %879 = vmatprep.subr.mxu0 0.0
        %880 = vmatpush1.msra.mxu0 0.0
        %881 = vmatprep.subr.mxu0 0.0
        %882 = vmatpush1.msra.mxu0 0.0
        %883 = vmatprep.subr.mxu0 0.0
        %884 = vmatpush1.msra.mxu0 0.0
        %885 = vmatprep.subr.mxu0 0.0
        %886 = vmatpush1.msra.mxu0 0.0
        %887 = vmatprep.subr.mxu0 0.0
        %888 = vmatpush1.msra.mxu0 0.0
        %889 = vmatprep.subr.mxu0 0.0
        %890 = vmatpush1.msra.mxu0 0.0
        %891 = vmatprep.subr.mxu0 0.0
        %892 = vmatpush1.msra.mxu0 0.0
        %893 = vmatprep.subr.mxu0 0.0
        %894 = vmatpush1.msra.mxu0 0.0
        %895 = vmatprep.subr.mxu0 0.0
        %896 = vmatpush1.msra.mxu0 0.0
        %897 = vmatprep.mubr.f32.mxu0 0.0
        %898 = vmatmul.mubr.f32.gmra.mrb[0].mxu0 %v831
        %v899 = vpop.f32.mrb[0].mxu0
        %v900 = vadd.f32 0.0, %v899
        %v901 = vpop.f32.mrb[0].mxu0
        %902 = vdwg.mxu0
        %v903 = vadd.f32 %v732, %v900
        %904 = vrot.lane.b32.xlu0 %v318, 104
        %v905 = vpop.permute.xlu0 %904
        %906 = vrot.lane.b32.xlu0 %v318, 72
        %v907 = vpop.permute.xlu0 %906
        %v908 = vsel %vm404, %v905, 0
        %v910 = vsel %vm404, %v907, 0
        %912 = vmatprep.subr.mxu0 0.0
        %913 = vmatpush1.xpose.msra.mxu0 %v910
        %914 = vmatprep.subr.mxu0 0.0
        %915 = vmatpush1.xpose.msra.mxu0 0.0
        %916 = vmatprep.subr.mxu0 0.0
        %917 = vmatpush1.xpose.msra.mxu0 0.0
        %918 = vmatprep.subr.mxu0 0.0
        %919 = vmatpush1.xpose.msra.mxu0 0.0
        %920 = vmatprep.subr.mxu0 0.0
        %921 = vmatpush1.xpose.msra.mxu0 0.0
        %922 = vmatprep.subr.mxu0 0.0
        %923 = vmatpush1.xpose.msra.mxu0 0.0
        %924 = vmatprep.subr.mxu0 0.0
        %925 = vmatpush1.xpose.msra.mxu0 0.0
        %926 = vmatprep.subr.mxu0 0.0
        %927 = vmatpush1.xpose.msra.mxu0 0.0
        %928 = vmatprep.subr.mxu0 0.0
        %929 = vmatpush1.xpose.msra.mxu0 0.0
        %930 = vmatprep.subr.mxu0 0.0
        %931 = vmatpush1.xpose.msra.mxu0 0.0
        %932 = vmatprep.subr.mxu0 0.0
        %933 = vmatpush1.xpose.msra.mxu0 0.0
        %934 = vmatprep.subr.mxu0 0.0
        %935 = vmatpush1.xpose.msra.mxu0 0.0
        %936 = vmatprep.subr.mxu0 0.0
        %937 = vmatpush1.xpose.msra.mxu0 0.0
        %938 = vmatprep.subr.mxu0 0.0
        %939 = vmatpush1.xpose.msra.mxu0 0.0
        %940 = vmatprep.subr.mxu0 0.0
        %941 = vmatpush1.xpose.msra.mxu0 0.0
        %942 = vmatprep.subr.mxu0 0.0
        %943 = vmatpush1.xpose.msra.mxu0 0.0
        %944 = vmatprep.subr.mxu0 0.0
        %945 = vmatpush1.xpose.msra.mxu0 0.0
        %946 = vmatprep.subr.mxu0 0.0
        %947 = vmatpush1.xpose.msra.mxu0 0.0
        %948 = vmatprep.subr.mxu0 0.0
        %949 = vmatpush1.xpose.msra.mxu0 0.0
        %950 = vmatprep.subr.mxu0 0.0
        %951 = vmatpush1.xpose.msra.mxu0 0.0
        %952 = vmatprep.subr.mxu0 0.0
        %953 = vmatpush1.xpose.msra.mxu0 0.0
        %954 = vmatprep.subr.mxu0 0.0
        %955 = vmatpush1.xpose.msra.mxu0 0.0
        %956 = vmatprep.subr.mxu0 0.0
        %957 = vmatpush1.xpose.msra.mxu0 0.0
        %958 = vmatprep.subr.mxu0 0.0
        %959 = vmatpush1.xpose.msra.mxu0 0.0
        %960 = vmatprep.subr.mxu0 0.0
        %961 = vmatpush1.xpose.msra.mxu0 0.0
        %962 = vmatprep.subr.mxu0 0.0
        %963 = vmatpush1.xpose.msra.mxu0 0.0
        %964 = vmatprep.subr.mxu0 0.0
        %965 = vmatpush1.xpose.msra.mxu0 0.0
        %966 = vmatprep.subr.mxu0 0.0
        %967 = vmatpush1.xpose.msra.mxu0 0.0
        %968 = vmatprep.subr.mxu0 0.0
        %969 = vmatpush1.xpose.msra.mxu0 0.0
        %970 = vmatprep.subr.mxu0 0.0
        %971 = vmatpush1.xpose.msra.mxu0 0.0
        %972 = vmatprep.subr.mxu0 0.0
        %973 = vmatpush1.xpose.msra.mxu0 0.0
        %974 = vmatprep.subr.mxu0 0.0
        %975 = vmatpush1.xpose.msra.mxu0 0.0
        %976 = vmatprep.mubr.f32.mxu0 0.0
        %977 = vmatmul.mubr.f32.gmra.mrb[0].mxu0 %v908
        %v978 = vpop.f32.mrb[0].mxu0
        %v979 = vadd.f32 %v400, %v978
        %v980 = vpop.f32.mrb[0].mxu0
        %981 = vdwg.mxu0
        %v982 = vsel %vm404, %v979, -inf
        %983 = vmax.xlane.f32.xlu0 %v982
        %v984 = vpop.xlane.xlu0 %983
        %v985 = vsub.f32 %v979, %v984
        %v986 = vmul.f32 %v985, 1.442695
        %v987 = vpow.pop %v986
        %v988 = vsel %vm404, %v987, 0.0
        %989 = vadd.xlane.f32.xlu0 %v988
        %v990 = vpop.xlane.xlu0 %989
        %v991 = vrcp.pop %v990
        %v992 = vmul.f32 %v990, %v991
        %v993 = vsub.f32 2.0, %v992
        %v994 = vmul.f32 %v991, %v993
        %v995 = vmul.f32 %v987, %v994
        %996 = vrot.lane.b32.xlu0 %v392, 32
        %v997 = vpop.permute.xlu0 %996
        %v1000 = vsel %vm404, %v995, 0
        %1002 = vmatprep.subr.mxu0 0.0
        %1003 = vmatpush1.msra.mxu0 %v997
        %1004 = vmatprep.subr.mxu0 0.0
        %1005 = vmatpush1.msra.mxu0 0.0
        %1006 = vmatprep.subr.mxu0 0.0
        %1007 = vmatpush1.msra.mxu0 0.0
        %1008 = vmatprep.subr.mxu0 0.0
        %1009 = vmatpush1.msra.mxu0 0.0
        %1010 = vmatprep.subr.mxu0 0.0
        %1011 = vmatpush1.msra.mxu0 0.0
        %1012 = vmatprep.subr.mxu0 0.0
        %1013 = vmatpush1.msra.mxu0 0.0
        %1014 = vmatprep.subr.mxu0 0.0
        %1015 = vmatpush1.msra.mxu0 0.0
        %1016 = vmatprep.subr.mxu0 0.0
        %1017 = vmatpush1.msra.mxu0 0.0
        %1018 = vmatprep.subr.mxu0 0.0
        %1019 = vmatpush1.msra.mxu0 0.0
        %1020 = vmatprep.subr.mxu0 0.0
        %1021 = vmatpush1.msra.mxu0 0.0
        %1022 = vmatprep.subr.mxu0 0.0
        %1023 = vmatpush1.msra.mxu0 0.0
        %1024 = vmatprep.subr.mxu0 0.0
        %1025 = vmatpush1.msra.mxu0 0.0
        %1026 = vmatprep.subr.mxu0 0.0
        %1027 = vmatpush1.msra.mxu0 0.0
        %1028 = vmatprep.subr.mxu0 0.0
        %1029 = vmatpush1.msra.mxu0 0.0
        %1030 = vmatprep.subr.mxu0 0.0
        %1031 = vmatpush1.msra.mxu0 0.0
        %1032 = vmatprep.subr.mxu0 0.0
        %1033 = vmatpush1.msra.mxu0 0.0
        %1034 = vmatprep.subr.mxu0 0.0
        %1035 = vmatpush1.msra.mxu0 0.0
        %1036 = vmatprep.subr.mxu0 0.0
        %1037 = vmatpush1.msra.mxu0 0.0
        %1038 = vmatprep.subr.mxu0 0.0
        %1039 = vmatpush1.msra.mxu0 0.0
        %1040 = vmatprep.subr.mxu0 0.0
        %1041 = vmatpush1.msra.mxu0 0.0
        %1042 = vmatprep.subr.mxu0 0.0
        %1043 = vmatpush1.msra.mxu0 0.0
        %1044 = vmatprep.subr.mxu0 0.0
        %1045 = vmatpush1.msra.mxu0 0.0
        %1046 = vmatprep.subr.mxu0 0.0
        %1047 = vmatpush1.msra.mxu0 0.0
        %1048 = vmatprep.subr.mxu0 0.0
        %1049 = vmatpush1.msra.mxu0 0.0
        %1050 = vmatprep.subr.mxu0 0.0
        %1051 = vmatpush1.msra.mxu0 0.0
        %1052 = vmatprep.subr.mxu0 0.0
        %1053 = vmatpush1.msra.mxu0 0.0
        %1054 = vmatprep.subr.mxu0 0.0
        %1055 = vmatpush1.msra.mxu0 0.0
        %1056 = vmatprep.subr.mxu0 0.0
        %1057 = vmatpush1.msra.mxu0 0.0
        %1058 = vmatprep.subr.mxu0 0.0
        %1059 = vmatpush1.msra.mxu0 0.0
        %1060 = vmatprep.subr.mxu0 0.0
        %1061 = vmatpush1.msra.mxu0 0.0
        %1062 = vmatprep.subr.mxu0 0.0
        %1063 = vmatpush1.msra.mxu0 0.0
        %1064 = vmatprep.subr.mxu0 0.0
        %1065 = vmatpush1.msra.mxu0 0.0
        %1066 = vmatprep.mubr.f32.mxu0 0.0
        %1067 = vmatmul.mubr.f32.gmra.mrb[0].mxu0 %v1000
        %v1068 = vpop.f32.mrb[0].mxu0
        %v1069 = vadd.f32 0.0, %v1068
        %v1070 = vpop.f32.mrb[0].mxu0
        %1071 = vdwg.mxu0
        %v1072 = vadd.f32 %v903, %v1069
        %v1073 = vld [vmem:[%s3] sm:$0x1]
        %v1075 = vlaneseq
        %v1076 = vshrl.u32 %v1075, 7
        %v1077 = vsub.s32 0, %v1076
        %v1078 = vrot.slane %v1073, %v1077
        %v1080 = vadd.f32 %v1072, %v1078
        %1081 = vst.msk [vmem:[%s241] sm:$0xff] %vm247, %v1080
        %s1082 = sand.u32 %s119, 1
        %s1083 = scalar_lea.sflag [#allocation4], %s1082
        %s1084 = sand.u32 %s119, 1
        %s1085 = smul.addr %s1084, 8
        %s1086 = scalar_lea.vmem [#allocation8], %s1085
        // Predicated region
        $region49: #{tpu_custom_call.1} parent=35 // pred_check
          %p1087 = pneg %p129
        $region50: #{tpu_custom_call.1} parent=35 // pred_check_branch
          %1089 = sbr.rel (%p1087) target = $region52
        $region51: #{tpu_custom_call.1} parent=35 // pred_region
          %s1091 = ssub.s32 128, 128
          %1092 = vsyncadd %s1083, %s1091
          %s1093 = smul.addr %s22, 128
          %s1094 = scalar_lea.hbm %s4, %s1093
          %s1096 = sshll.u32 %s1086, 4
          %s1097 = int_to_ptr.vmem [resolvable:$true] %s1096
          %1099 = dma.vmem_to_hbm [thread:$0]  %s1097, 128, %s1094, %s1083
        $region52: #{tpu_custom_call.1} parent=35 // pred_fallthru
          _
      $region36: #{tpu_custom_call.1} parent=5 // pred_fallthru
        _
      %p1100 = scmp.le.s32.totalorder 2, %s17
      // Predicated region
      $region53: #{tpu_custom_call.1} parent=5 // pred_check
        %p1101 = pneg %p1100
      $region54: #{tpu_custom_call.1} parent=5 // pred_check_branch
        %1103 = sbr.rel (%p1101) target = $region56
      $region55: #{tpu_custom_call.1} parent=5 // pred_region
        %s1104 = ssub.s32 %s17, 2
        // Predicated region
        $region57: #{tpu_custom_call.1} parent=55 // pred_check
          %p1105 = pneg %p135
        $region58: #{tpu_custom_call.1} parent=55 // pred_check_branch
          %1107 = sbr.rel (%p1105) target = $region60
        $region59: #{tpu_custom_call.1} parent=55 // pred_region
          %s1108 = sand.u32 %s120, 1
          %s1109 = scalar_lea.sflag [#allocation4], %s1108
          %s1110 = sand.u32 %s120, 1
          %s1111 = smul.addr %s1110, 8
          %s1112 = scalar_lea.vmem [#allocation8], %s1111
          %1113 = dma.done %s1109, 128
        $region60: #{tpu_custom_call.1} parent=55 // pred_fallthru
          _
      $region56: #{tpu_custom_call.1} parent=5 // pred_fallthru
        _
    $region6: #{tpu_custom_call.1} parent=1 // loop_footer
      %s21 = sadd.s32 1, %s17
    $region7: #{tpu_custom_call.1} parent=1 // loop_footer_branch
      %16 = sbr.rel target = $region3
    $region8: #{tpu_custom_call.1} parent=1 // loop_exit
      _
    %1114 = vsyncpa [#allocation3], 1
    %s1115 = scalar_lea.sflag [#allocation3], 1
    %1116 = vsyncpa %s1115, 1
    %1117 = vsyncpa [#allocation6], 1
    %1118 = vsyncpa [#allocation4], 1
    %s1119 = scalar_lea.sflag [#allocation4], 1
    %1120 = vsyncpa %s1119, 1

</llo_original>
